<compile_context>
chip_gen: v5e
topology: v5e:2x2
jax: 0.10.0
libtpu: 0.0.40
codegen_flags: <defaults>
</compile_context>

<pallas_src>
import functools
import math

import jax
import jax.numpy as jnp
from jax.experimental import pallas as pl
from jax.experimental.pallas import tpu as pltpu


def _round_up(x, m):
    return (x + m - 1) // m * m


def _mmec_kernel(x_ref, w_ref, b_ref, o_ref, acc_ref, *, num_modes):
    """Computes one (tb, tc) tile of the output logits, reduced over the K axis.

    x_ref:   (tb, tk)      bf16  input-embedding tile
    w_ref:   (M, tk, tc)   bf16  per-mode weight tiles (class index on lanes)
    b_ref:   (1, tc)       f32   mode-summed bias tile
    o_ref:   (tb, tc)      f32   output logits tile
    acc_ref: (tb, tc)      f32   accumulator, persistent across the K grid axis
    """
    k = pl.program_id(2)

    # Fold the bias into the accumulator init so it is added exactly once.
    @pl.when(k == 0)
    def _():
        acc_ref[...] = jnp.broadcast_to(b_ref[...], acc_ref.shape)

    x = x_ref[...]
    acc = acc_ref[...]
    # PartialSum over modes == accumulate the M per-mode matmuls into one f32
    # accumulator.  No ones-matrix, no (B, C*M) intermediate, MXU-only work.
    for m in range(num_modes):
        acc += jnp.dot(x, w_ref[m], preferred_element_type=jnp.float32)
    acc_ref[...] = acc

    @pl.when(k == pl.num_programs(2) - 1)
    def _():
        o_ref[...] = acc_ref[...].astype(o_ref.dtype)


def multi_mode_embedding_classification(
    x, w_mdc, b_mc, *, block_b=256, block_c=512, block_k=512
):
    """x: (B, D) f32, w_mdc: (M, D, C) f32, b_mc: (M, C) f32 -> (B, C) f32 logits."""
    B, D = x.shape
    M, D2, C = w_mdc.shape
    assert D2 == D and b_mc.shape == (M, C)

    def _pad_and_tile(dim, target, align):
        padded = _round_up(dim, align)
        if padded <= target:
            return padded, padded          # single tile covers the whole dim
        return _round_up(dim, target), target

    # Layout plumbing in the wrapper: lane/sublane-aligned, lane-dense output.
    B_pad, tb = _pad_and_tile(B, block_b, 8)
    D_pad, tk = _pad_and_tile(D, block_k, 128)
    C_pad, tc = _pad_and_tile(C, block_c, 128)

    x_p = jnp.zeros((B_pad, D_pad), jnp.bfloat16).at[:B, :D].set(
        x.astype(jnp.bfloat16))
    w_p = jnp.zeros((M, D_pad, C_pad), jnp.bfloat16).at[:, :D, :C].set(
        w_mdc.astype(jnp.bfloat16))
    # Mode-summed bias (exactly equivalent since PartialSum is linear), f32.
    b_p = jnp.zeros((1, C_pad), jnp.float32).at[0, :C].set(
        b_mc.astype(jnp.float32).sum(axis=0))

    grid = (B_pad // tb, C_pad // tc, D_pad // tk)

    cost = pl.CostEstimate(
        flops=2 * B_pad * D_pad * M * C_pad,
        transcendentals=0,
        bytes_accessed=int(x_p.size * 2 + w_p.size * 2 + b_p.size * 4
                           + B_pad * C_pad * 4),
    )

    out = pl.pallas_call(
        functools.partial(_mmec_kernel, num_modes=M),
        out_shape=jax.ShapeDtypeStruct((B_pad, C_pad), jnp.float32),
        grid_spec=pltpu.PrefetchScalarGridSpec(
            num_scalar_prefetch=0,
            grid=grid,
            in_specs=[
                pl.BlockSpec((tb, tk), lambda i, j, k: (i, k)),
                pl.BlockSpec((M, tk, tc), lambda i, j, k: (0, k, j)),
                pl.BlockSpec((1, tc), lambda i, j, k: (0, j)),
            ],
            out_specs=pl.BlockSpec((tb, tc), lambda i, j, k: (i, j)),
            scratch_shapes=[pltpu.VMEM((tb, tc), jnp.float32)],
        ),
        compiler_params=pltpu.CompilerParams(
            dimension_semantics=("parallel", "parallel", "arbitrary"),
            vmem_limit_bytes=32 * 1024 * 1024,
        ),
        cost_estimate=cost,
    )(x_p, w_p, b_p)

    return out[:B, :C]


def build_params(key, num_modes, input_size, num_classes):
    """Deterministic init mirroring the PyTorch module's __init__.

    Returns W stacked as (M, D, C) -- class index on the fast (lane) axis --
    and biases as (M, C).
    """
    std = math.sqrt(2.0 / (input_size + num_modes))   # xavier_normal_, gain=1
    bound = 1.0 / math.sqrt(input_size)               # default nn.Linear bias init
    keys = jax.random.split(key, 2 * num_classes)
    ws, bs = [], []
    for i in range(num_classes):
        w_i = jax.random.normal(keys[2 * i], (num_modes, input_size),
                                jnp.float32) * std
        b_i = jax.random.uniform(keys[2 * i + 1], (num_modes,), jnp.float32,
                                 -bound, bound)
        ws.append(w_i)
        bs.append(b_i)
    w_cmd = jnp.stack(ws, axis=0)                     # (C, M, D)
    w_mdc = jnp.transpose(w_cmd, (1, 2, 0))           # (M, D, C)
    b_mc = jnp.transpose(jnp.stack(bs, axis=0))       # (M, C)
    return w_mdc, b_mc


def reference_forward(x, w_mdc, b_mc):
    """Plain-JAX f32 reference with the module's exact semantics."""
    y = jnp.einsum("bd,mdc->bmc", x, w_mdc) + b_mc[None, :, :]   # (B, M, C)
    return jnp.sum(y, axis=1)                                    # PartialSum


if __name__ == "__main__":
    batch = 8
    input_size = 32
    num_modes = 4
    num_classes = 10

    key = jax.random.PRNGKey(0)
    key, kx = jax.random.split(key)
    x = jax.random.normal(kx, (batch, input_size), jnp.float32)

    w_mdc, b_mc = build_params(key, num_modes, input_size, num_classes)

    out = multi_mode_embedding_classification(x, w_mdc, b_mc)
    out = jax.block_until_ready(out)
    assert out.shape == (batch, num_classes)

    # Check against the f32 module semantics (loose: kernel uses bf16 MXU inputs).
    ref_f32 = reference_forward(x, w_mdc, b_mc)
    assert jnp.allclose(out, ref_f32, atol=1e-1, rtol=2e-2), float(
        jnp.max(jnp.abs(out - ref_f32)))

    # Check against a reference that uses the same bf16-in / f32-accumulate numerics.
    y_bf16 = jnp.einsum(
        "bd,mdc->bmc",
        x.astype(jnp.bfloat16),
        w_mdc.astype(jnp.bfloat16),
        preferred_element_type=jnp.float32,
    ) + b_mc[None, :, :].astype(jnp.float32)
    ref_bf16 = jnp.sum(y_bf16, axis=1)
    assert jnp.allclose(out, ref_bf16, atol=2e-3, rtol=2e-3), float(
        jnp.max(jnp.abs(out - ref_bf16)))

    print("KERNEL_OK")
</pallas_src>

<mosaic_0001>
module attributes {stable_mosaic.version = 11 : i64} {
  func.func @_mmec_kernel(%arg0: i32, %arg1: i32, %arg2: i32, %arg3: memref<8x128xbf16, #tpu.memory_space<vmem>>, %arg4: memref<4x128x128xbf16, #tpu.memory_space<vmem>>, %arg5: memref<1x128xf32, #tpu.memory_space<vmem>>, %arg6: memref<8x128xf32, #tpu.memory_space<vmem>>, %arg7: memref<8x128xf32, #tpu.memory_space<vmem>>) attributes {dimension_semantics = [#tpu.dimension_semantics<parallel>, #tpu.dimension_semantics<parallel>, #tpu.dimension_semantics<arbitrary>], iteration_bounds = array<i64: 1, 1, 1>, scalar_prefetch = 0 : i64, scratch_operands = 1 : i64, tpu.core_type = #tpu.core_type<tc>, window_params = [{transform_indices = @transform_0, window_bounds = array<i64: 8, 128>}, {transform_indices = @transform_1, window_bounds = array<i64: 4, 128, 128>}, {transform_indices = @transform_2, window_bounds = array<i64: 1, 128>}, {transform_indices = @transform_3, window_bounds = array<i64: 8, 128>}]} {
    %c0_i32 = arith.constant 0 : i32
    %0 = arith.cmpi eq, %arg2, %c0_i32 : i32
    %1 = arith.extui %0 : i1 to i32
    %c0_i32_0 = arith.constant 0 : i32
    %2 = arith.cmpi ne, %1, %c0_i32_0 : i32
    scf.if %2 {
      %c0_20 = arith.constant 0 : index
      %c0_21 = arith.constant 0 : index
      %25 = vector.load %arg5[%c0_20, %c0_21] : memref<1x128xf32, #tpu.memory_space<vmem>>, vector<1x128xf32>
      %26 = vector.shape_cast %25 : vector<1x128xf32> to vector<1x128xf32>
      %27 = vector.broadcast %26 : vector<1x128xf32> to vector<8x128xf32>
      %c0_22 = arith.constant 0 : index
      %c0_23 = arith.constant 0 : index
      %28 = vector.load %arg7[%c0_22, %c0_23] : memref<8x128xf32, #tpu.memory_space<vmem>>, vector<8x128xf32>
      tpu.vector_store %arg7[%c0_22, %c0_23], %27 {strides = array<i32>} : memref<8x128xf32, #tpu.memory_space<vmem>>, vector<8x128xf32>,
    } else {
    }
    %c0 = arith.constant 0 : index
    %c0_1 = arith.constant 0 : index
    %3 = vector.load %arg3[%c0, %c0_1] : memref<8x128xbf16, #tpu.memory_space<vmem>>, vector<8x128xbf16>
    %c0_2 = arith.constant 0 : index
    %c0_3 = arith.constant 0 : index
    %4 = vector.load %arg7[%c0_2, %c0_3] : memref<8x128xf32, #tpu.memory_space<vmem>>, vector<8x128xf32>
    %c0_4 = arith.constant 0 : index
    %c0_5 = arith.constant 0 : index
    %c0_6 = arith.constant 0 : index
    %5 = vector.load %arg4[%c0_4, %c0_5, %c0_6] : memref<4x128x128xbf16, #tpu.memory_space<vmem>>, vector<1x128x128xbf16>
    %6 = vector.shape_cast %5 : vector<1x128x128xbf16> to vector<128x128xbf16>
    %cst = arith.constant dense<0.000000e+00> : vector<8x128xf32>
    %7 = tpu.matmul %3, %6, %cst {dimension_numbers = #tpu.dot_dimension_numbers<[1], [0], [0], [1], [0, 0, 1, 1], [], []>} : vector<8x128xbf16>, vector<128x128xbf16>, vector<8x128xf32> -> vector<8x128xf32>
    %8 = arith.addf %4, %7 : vector<8x128xf32>
    %c1 = arith.constant 1 : index
    %c0_7 = arith.constant 0 : index
    %c0_8 = arith.constant 0 : index
    %9 = vector.load %arg4[%c1, %c0_7, %c0_8] : memref<4x128x128xbf16, #tpu.memory_space<vmem>>, vector<1x128x128xbf16>
    %10 = vector.shape_cast %9 : vector<1x128x128xbf16> to vector<128x128xbf16>
    %cst_9 = arith.constant dense<0.000000e+00> : vector<8x128xf32>
    %11 = tpu.matmul %3, %10, %cst_9 {dimension_numbers = #tpu.dot_dimension_numbers<[1], [0], [0], [1], [0, 0, 1, 1], [], []>} : vector<8x128xbf16>, vector<128x128xbf16>, vector<8x128xf32> -> vector<8x128xf32>
    %12 = arith.addf %8, %11 : vector<8x128xf32>
    %c2 = arith.constant 2 : index
    %c0_10 = arith.constant 0 : index
    %c0_11 = arith.constant 0 : index
    %13 = vector.load %arg4[%c2, %c0_10, %c0_11] : memref<4x128x128xbf16, #tpu.memory_space<vmem>>, vector<1x128x128xbf16>
    %14 = vector.shape_cast %13 : vector<1x128x128xbf16> to vector<128x128xbf16>
    %cst_12 = arith.constant dense<0.000000e+00> : vector<8x128xf32>
    %15 = tpu.matmul %3, %14, %cst_12 {dimension_numbers = #tpu.dot_dimension_numbers<[1], [0], [0], [1], [0, 0, 1, 1], [], []>} : vector<8x128xbf16>, vector<128x128xbf16>, vector<8x128xf32> -> vector<8x128xf32>
    %16 = arith.addf %12, %15 : vector<8x128xf32>
    %c3 = arith.constant 3 : index
    %c0_13 = arith.constant 0 : index
    %c0_14 = arith.constant 0 : index
    %17 = vector.load %arg4[%c3, %c0_13, %c0_14] : memref<4x128x128xbf16, #tpu.memory_space<vmem>>, vector<1x128x128xbf16>
    %18 = vector.shape_cast %17 : vector<1x128x128xbf16> to vector<128x128xbf16>
    %cst_15 = arith.constant dense<0.000000e+00> : vector<8x128xf32>
    %19 = tpu.matmul %3, %18, %cst_15 {dimension_numbers = #tpu.dot_dimension_numbers<[1], [0], [0], [1], [0, 0, 1, 1], [], []>} : vector<8x128xbf16>, vector<128x128xbf16>, vector<8x128xf32> -> vector<8x128xf32>
    %20 = arith.addf %16, %19 : vector<8x128xf32>
    %c0_16 = arith.constant 0 : index
    %c0_17 = arith.constant 0 : index
    %21 = vector.load %arg7[%c0_16, %c0_17] : memref<8x128xf32, #tpu.memory_space<vmem>>, vector<8x128xf32>
    tpu.vector_store %arg7[%c0_16, %c0_17], %20 {strides = array<i32>} : memref<8x128xf32, #tpu.memory_space<vmem>>, vector<8x128xf32>,
    %c0_i32_18 = arith.constant 0 : i32
    %22 = arith.cmpi eq, %arg2, %c0_i32_18 : i32
    %23 = arith.extui %22 : i1 to i32
    %c0_i32_19 = arith.constant 0 : i32
    %24 = arith.cmpi ne, %23, %c0_i32_19 : i32
    scf.if %24 {
      %c0_20 = arith.constant 0 : index
      %c0_21 = arith.constant 0 : index
      %25 = vector.load %arg7[%c0_20, %c0_21] : memref<8x128xf32, #tpu.memory_space<vmem>>, vector<8x128xf32>
      %c0_22 = arith.constant 0 : index
      %c0_23 = arith.constant 0 : index
      %26 = vector.load %arg6[%c0_22, %c0_23] : memref<8x128xf32, #tpu.memory_space<vmem>>, vector<8x128xf32>
      tpu.vector_store %arg6[%c0_22, %c0_23], %25 {strides = array<i32>} : memref<8x128xf32, #tpu.memory_space<vmem>>, vector<8x128xf32>,
    } else {
    }
    return
  }
  func.func @transform_0(%arg0: i32, %arg1: i32, %arg2: i32) -> (i32, i32) {
    %c0_i32 = arith.constant 0 : i32
    return %arg0, %arg2 : i32, i32
  }
  func.func @transform_1(%arg0: i32, %arg1: i32, %arg2: i32) -> (i32, i32, i32) {
    %c0_i32 = arith.constant 0 : i32
    %c0_i32_0 = arith.constant 0 : i32
    return %c0_i32, %arg2, %arg1 : i32, i32, i32
  }
  func.func @transform_2(%arg0: i32, %arg1: i32, %arg2: i32) -> (i32, i32) {
    %c0_i32 = arith.constant 0 : i32
    %c0_i32_0 = arith.constant 0 : i32
    return %c0_i32, %arg1 : i32, i32
  }
  func.func @transform_3(%arg0: i32, %arg1: i32, %arg2: i32) -> (i32, i32) {
    %c0_i32 = arith.constant 0 : i32
    return %arg0, %arg1 : i32, i32
  }
}

</mosaic_0001>

<llo_original>
// kernel: tpu_custom_call.1
$region0: #{tpu_custom_call.1}
  #allocation0 [shape = 'u32[]', space=smem, size = 0x4, offset = 0x4, fixed_abs, tag = 'smem constant byte address 0x4 - core index']
  #allocation1 [shape = 'u32[72,128]{1,0:T(1,128)}', space=vmem, size = 0x9000, scoped, tag = 'internal scratch']
  #allocation2 [shape = 'f32[8,128]{1,0:T(8,128)}', space=vmem, size = 0x1000, scoped, tag = 'scratch operand']
  %s0 = inlined_call_operand.hbm [shape: bf16[8,128], index: 0, kind: input, shape index: {}]
  %s1 = inlined_call_operand.hbm [shape: bf16[4,128,128], index: 1, kind: input, shape index: {}]
  %s2 = inlined_call_operand.vmem [shape: f32[1,128], index: 2, kind: input, shape index: {}]
  %s3 = inlined_call_operand.hbm [shape: f32[8,128], index: 3, kind: output, shape index: {}]
  %s4 = sld [smem:[#allocation0]]
  $region38: #{tpu_custom_call.1} parent=0
    _
  %s6 = ssub.s32 1, %s4
  %s7 = scalar_select 0, %s6, %s4
  $region1: #{tpu_custom_call.1} parent=0
    #allocation3 [shape = 'u8[2048]{0}', space=vmem, size = 0x800, scoped, tag = 'input window, operand 0, single buffered']
    #allocation4 [shape = 's32[1]{0}', space=sflag, size = 0x4, scoped, tag = 'scoped memory for tpu_custom_call.1']
    #allocation5 [shape = 's32[1]{0}', space=sflag, size = 0x4, scoped, tag = 'scoped memory for tpu_custom_call.1']
    #allocation6 [shape = 'u8[131072]{0}', space=vmem, size = 0x20000, scoped, tag = 'input window, operand 1, single buffered']
    #allocation7 [shape = 's32[1]{0}', space=sflag, size = 0x4, scoped, tag = 'scoped memory for tpu_custom_call.1']
    #allocation8 [shape = 'u8[4096]{0}', space=vmem, size = 0x1000, scoped, tag = 'output window, operand 0, single buffered']
    %8 = vsyncpa [#allocation4], 0
    %9 = vsyncpa [#allocation7], 0
    %10 = vsyncpa [#allocation5], 0
    // Predicated region
    $region2: #{tpu_custom_call.1} parent=1 // pred_check
      _
    $region3: #{tpu_custom_call.1} parent=1 // pred_check_branch
      %12 = sbr.rel (0) target = $region5
    $region4: #{tpu_custom_call.1} parent=1 // pred_region
      %14 = vsyncadd [#allocation4], 0
      %s16 = sshll.u32 %s0, 4
      %s17 = int_to_ptr.hbm [resolvable:$true] %s16
      %s18 = sshll.u32 [#allocation3], 4
      %s19 = int_to_ptr.vmem [resolvable:$true] %s18
      %21 = dma.hbm_to_vmem [thread:$0]  %s17, 64, %s19, [#allocation4]
    $region5: #{tpu_custom_call.1} parent=1 // pred_fallthru
      _
    // Predicated region
    $region6: #{tpu_custom_call.1} parent=1 // pred_check
      _
    $region7: #{tpu_custom_call.1} parent=1 // pred_check_branch
      %23 = sbr.rel (0) target = $region9
    $region8: #{tpu_custom_call.1} parent=1 // pred_region
      %25 = vsyncadd [#allocation7], 0
      %s26 = sshll.u32 %s1, 4
      %s27 = int_to_ptr.hbm [resolvable:$true] %s26
      %s28 = sshll.u32 [#allocation6], 4
      %s29 = int_to_ptr.vmem [resolvable:$true] %s28
      %34 = dma.hbm_to_vmem [thread:$0]  %s27, 4096, %s29, [#allocation7], 64, 64, 4
    $region9: #{tpu_custom_call.1} parent=1 // pred_fallthru
      _
    // Predicated region
    $region10: #{tpu_custom_call.1} parent=1 // pred_check
      _
    $region11: #{tpu_custom_call.1} parent=1 // pred_check_branch
      %36 = sbr.rel (0) target = $region13
    $region12: #{tpu_custom_call.1} parent=1 // pred_region
      _
    $region13: #{tpu_custom_call.1} parent=1 // pred_fallthru
      _
    // Predicated region
    $region14: #{tpu_custom_call.1} parent=1 // pred_check
      _
    $region15: #{tpu_custom_call.1} parent=1 // pred_check_branch
      %38 = sbr.rel (0) target = $region17
    $region16: #{tpu_custom_call.1} parent=1 // pred_region
      %40 = dma.done [#allocation4], 64
    $region17: #{tpu_custom_call.1} parent=1 // pred_fallthru
      _
    // Predicated region
    $region18: #{tpu_custom_call.1} parent=1 // pred_check
      _
    $region19: #{tpu_custom_call.1} parent=1 // pred_check_branch
      %42 = sbr.rel (0) target = $region21
    $region20: #{tpu_custom_call.1} parent=1 // pred_region
      %44 = dma.done [#allocation7], 4096
    $region21: #{tpu_custom_call.1} parent=1 // pred_fallthru
      _
    %p45 = scmp.eq.s32.totalorder 0, 0
    // Predicated region
    $region22: #{tpu_custom_call.1} parent=1 // pred_check
      %p46 = pneg %p45
    $region23: #{tpu_custom_call.1} parent=1 // pred_check_branch
      %48 = sbr.rel (%p46) target = $region25
    $region24: #{tpu_custom_call.1} parent=1 // pred_region
      %v49 = vld [vmem:[%s2] sm:$0x1]
      %v51 = vperm.slane %v49, 0
      %53 = vst [vmem:[#allocation2] sm:$0xff] %v51
    $region25: #{tpu_custom_call.1} parent=1 // pred_fallthru
      _
    %v54 = vld [vmem:[#allocation3] sm:$0xf]
    %v55 = vld [vmem:[#allocation2] sm:$0xff]
    %v56 = vld [vmem:[#allocation6] sm:$0xf]
    %v57 = vld [vmem:[#allocation6 + $0x4] sm:$0xf]
    %v58 = vld [vmem:[#allocation6 + $0x8] sm:$0xf]
    %v59 = vld [vmem:[#allocation6 + $0xc] sm:$0xf]
    %v60 = vld [vmem:[#allocation6 + $0x10] sm:$0xf]
    %v61 = vld [vmem:[#allocation6 + $0x14] sm:$0xf]
    %v62 = vld [vmem:[#allocation6 + $0x18] sm:$0xf]
    %v63 = vld [vmem:[#allocation6 + $0x1c] sm:$0xf]
    %v64 = vld [vmem:[#allocation6 + $0x20] sm:$0xf]
    %v65 = vld [vmem:[#allocation6 + $0x24] sm:$0xf]
    %v66 = vld [vmem:[#allocation6 + $0x28] sm:$0xf]
    %v67 = vld [vmem:[#allocation6 + $0x2c] sm:$0xf]
    %v68 = vld [vmem:[#allocation6 + $0x30] sm:$0xf]
    %v69 = vld [vmem:[#allocation6 + $0x34] sm:$0xf]
    %v70 = vld [vmem:[#allocation6 + $0x38] sm:$0xf]
    %v71 = vld [vmem:[#allocation6 + $0x3c] sm:$0xf]
    %v88 = vunpack.c.l.b16 %v56
    %v89 = vunpack.c.l.b16 %v57
    %v90 = vunpack.c.l.b16 %v58
    %v91 = vunpack.c.l.b16 %v59
    %v92 = vunpack.c.l.b16 %v60
    %v93 = vunpack.c.l.b16 %v61
    %v94 = vunpack.c.l.b16 %v62
    %v95 = vunpack.c.l.b16 %v63
    %v96 = vunpack.c.l.b16 %v64
    %v97 = vunpack.c.l.b16 %v65
    %v98 = vunpack.c.l.b16 %v66
    %v99 = vunpack.c.l.b16 %v67
    %v100 = vunpack.c.l.b16 %v68
    %v101 = vunpack.c.l.b16 %v69
    %v102 = vunpack.c.l.b16 %v70
    %v103 = vunpack.c.l.b16 %v71
    %v104 = vpack.c.b16 %v89, %v88
    %v105 = vpack.c.b16 %v91, %v90
    %v106 = vpack.c.b16 %v93, %v92
    %v107 = vpack.c.b16 %v95, %v94
    %v108 = vpack.c.b16 %v97, %v96
    %v109 = vpack.c.b16 %v99, %v98
    %v110 = vpack.c.b16 %v101, %v100
    %v111 = vpack.c.b16 %v103, %v102
    %120 = vmatpush.bf16.msra.mxu0 %v111
    %121 = vmatpush.bf16.msra.mxu0 %v110
    %122 = vmatpush.bf16.msra.mxu0 %v109
    %123 = vmatpush.bf16.msra.mxu0 %v108
    %124 = vmatpush.bf16.msra.mxu0 %v107
    %125 = vmatpush.bf16.msra.mxu0 %v106
    %126 = vmatpush.bf16.msra.mxu0 %v105
    %127 = vmatpush.bf16.msra.mxu0 %v104
    %128 = vmatmul.bf16.gmra.mxu0 %v54
    %v129 = vpop.f32.mrf.mxu0
    %v130 = vadd.f32 0.0, %v129
    %v131 = vpop.f32.mrf.mxu0
    %132 = vdwg.mxu0
    %v133 = vadd.f32 %v55, %v130
    %s134 = scalar_lea.vmem [#allocation6], 64
    %v135 = vld [vmem:[%s134] sm:$0xf]
    %v136 = vld [vmem:[%s134 + $0x4] sm:$0xf]
    %v137 = vld [vmem:[%s134 + $0x8] sm:$0xf]
    %v138 = vld [vmem:[%s134 + $0xc] sm:$0xf]
    %v139 = vld [vmem:[%s134 + $0x10] sm:$0xf]
    %v140 = vld [vmem:[%s134 + $0x14] sm:$0xf]
    %v141 = vld [vmem:[%s134 + $0x18] sm:$0xf]
    %v142 = vld [vmem:[%s134 + $0x1c] sm:$0xf]
    %v143 = vld [vmem:[%s134 + $0x20] sm:$0xf]
    %v144 = vld [vmem:[%s134 + $0x24] sm:$0xf]
    %v145 = vld [vmem:[%s134 + $0x28] sm:$0xf]
    %v146 = vld [vmem:[%s134 + $0x2c] sm:$0xf]
    %v147 = vld [vmem:[%s134 + $0x30] sm:$0xf]
    %v148 = vld [vmem:[%s134 + $0x34] sm:$0xf]
    %v149 = vld [vmem:[%s134 + $0x38] sm:$0xf]
    %v150 = vld [vmem:[%s134 + $0x3c] sm:$0xf]
    %v167 = vunpack.c.l.b16 %v135
    %v168 = vunpack.c.l.b16 %v136
    %v169 = vunpack.c.l.b16 %v137
    %v170 = vunpack.c.l.b16 %v138
    %v171 = vunpack.c.l.b16 %v139
    %v172 = vunpack.c.l.b16 %v140
    %v173 = vunpack.c.l.b16 %v141
    %v174 = vunpack.c.l.b16 %v142
    %v175 = vunpack.c.l.b16 %v143
    %v176 = vunpack.c.l.b16 %v144
    %v177 = vunpack.c.l.b16 %v145
    %v178 = vunpack.c.l.b16 %v146
    %v179 = vunpack.c.l.b16 %v147
    %v180 = vunpack.c.l.b16 %v148
    %v181 = vunpack.c.l.b16 %v149
    %v182 = vunpack.c.l.b16 %v150
    %v183 = vpack.c.b16 %v168, %v167
    %v184 = vpack.c.b16 %v170, %v169
    %v185 = vpack.c.b16 %v172, %v171
    %v186 = vpack.c.b16 %v174, %v173
    %v187 = vpack.c.b16 %v176, %v175
    %v188 = vpack.c.b16 %v178, %v177
    %v189 = vpack.c.b16 %v180, %v179
    %v190 = vpack.c.b16 %v182, %v181
    %199 = vmatpush.bf16.msra.mxu0 %v190
    %200 = vmatpush.bf16.msra.mxu0 %v189
    %201 = vmatpush.bf16.msra.mxu0 %v188
    %202 = vmatpush.bf16.msra.mxu0 %v187
    %203 = vmatpush.bf16.msra.mxu0 %v186
    %204 = vmatpush.bf16.msra.mxu0 %v185
    %205 = vmatpush.bf16.msra.mxu0 %v184
    %206 = vmatpush.bf16.msra.mxu0 %v183
    %207 = vmatmul.bf16.gmra.mxu0 %v54
    %v208 = vpop.f32.mrf.mxu0
    %v209 = vadd.f32 0.0, %v208
    %v210 = vpop.f32.mrf.mxu0
    %211 = vdwg.mxu0
    %v212 = vadd.f32 %v133, %v209
    %s213 = scalar_lea.vmem [#allocation6], 128
    %v214 = vld [vmem:[%s213] sm:$0xf]
    %v215 = vld [vmem:[%s213 + $0x4] sm:$0xf]
    %v216 = vld [vmem:[%s213 + $0x8] sm:$0xf]
    %v217 = vld [vmem:[%s213 + $0xc] sm:$0xf]
    %v218 = vld [vmem:[%s213 + $0x10] sm:$0xf]
    %v219 = vld [vmem:[%s213 + $0x14] sm:$0xf]
    %v220 = vld [vmem:[%s213 + $0x18] sm:$0xf]
    %v221 = vld [vmem:[%s213 + $0x1c] sm:$0xf]
    %v222 = vld [vmem:[%s213 + $0x20] sm:$0xf]
    %v223 = vld [vmem:[%s213 + $0x24] sm:$0xf]
    %v224 = vld [vmem:[%s213 + $0x28] sm:$0xf]
    %v225 = vld [vmem:[%s213 + $0x2c] sm:$0xf]
    %v226 = vld [vmem:[%s213 + $0x30] sm:$0xf]
    %v227 = vld [vmem:[%s213 + $0x34] sm:$0xf]
    %v228 = vld [vmem:[%s213 + $0x38] sm:$0xf]
    %v229 = vld [vmem:[%s213 + $0x3c] sm:$0xf]
    %v246 = vunpack.c.l.b16 %v214
    %v247 = vunpack.c.l.b16 %v215
    %v248 = vunpack.c.l.b16 %v216
    %v249 = vunpack.c.l.b16 %v217
    %v250 = vunpack.c.l.b16 %v218
    %v251 = vunpack.c.l.b16 %v219
    %v252 = vunpack.c.l.b16 %v220
    %v253 = vunpack.c.l.b16 %v221
    %v254 = vunpack.c.l.b16 %v222
    %v255 = vunpack.c.l.b16 %v223
    %v256 = vunpack.c.l.b16 %v224
    %v257 = vunpack.c.l.b16 %v225
    %v258 = vunpack.c.l.b16 %v226
    %v259 = vunpack.c.l.b16 %v227
    %v260 = vunpack.c.l.b16 %v228
    %v261 = vunpack.c.l.b16 %v229
    %v262 = vpack.c.b16 %v247, %v246
    %v263 = vpack.c.b16 %v249, %v248
    %v264 = vpack.c.b16 %v251, %v250
    %v265 = vpack.c.b16 %v253, %v252
    %v266 = vpack.c.b16 %v255, %v254
    %v267 = vpack.c.b16 %v257, %v256
    %v268 = vpack.c.b16 %v259, %v258
    %v269 = vpack.c.b16 %v261, %v260
    %278 = vmatpush.bf16.msra.mxu0 %v269
    %279 = vmatpush.bf16.msra.mxu0 %v268
    %280 = vmatpush.bf16.msra.mxu0 %v267
    %281 = vmatpush.bf16.msra.mxu0 %v266
    %282 = vmatpush.bf16.msra.mxu0 %v265
    %283 = vmatpush.bf16.msra.mxu0 %v264
    %284 = vmatpush.bf16.msra.mxu0 %v263
    %285 = vmatpush.bf16.msra.mxu0 %v262
    %286 = vmatmul.bf16.gmra.mxu0 %v54
    %v287 = vpop.f32.mrf.mxu0
    %v288 = vadd.f32 0.0, %v287
    %v289 = vpop.f32.mrf.mxu0
    %290 = vdwg.mxu0
    %v291 = vadd.f32 %v212, %v288
    %s292 = scalar_lea.vmem [#allocation6], 192
    %v293 = vld [vmem:[%s292] sm:$0xf]
    %v294 = vld [vmem:[%s292 + $0x4] sm:$0xf]
    %v295 = vld [vmem:[%s292 + $0x8] sm:$0xf]
    %v296 = vld [vmem:[%s292 + $0xc] sm:$0xf]
    %v297 = vld [vmem:[%s292 + $0x10] sm:$0xf]
    %v298 = vld [vmem:[%s292 + $0x14] sm:$0xf]
    %v299 = vld [vmem:[%s292 + $0x18] sm:$0xf]
    %v300 = vld [vmem:[%s292 + $0x1c] sm:$0xf]
    %v301 = vld [vmem:[%s292 + $0x20] sm:$0xf]
    %v302 = vld [vmem:[%s292 + $0x24] sm:$0xf]
    %v303 = vld [vmem:[%s292 + $0x28] sm:$0xf]
    %v304 = vld [vmem:[%s292 + $0x2c] sm:$0xf]
    %v305 = vld [vmem:[%s292 + $0x30] sm:$0xf]
    %v306 = vld [vmem:[%s292 + $0x34] sm:$0xf]
    %v307 = vld [vmem:[%s292 + $0x38] sm:$0xf]
    %v308 = vld [vmem:[%s292 + $0x3c] sm:$0xf]
    %v325 = vunpack.c.l.b16 %v293
    %v326 = vunpack.c.l.b16 %v294
    %v327 = vunpack.c.l.b16 %v295
    %v328 = vunpack.c.l.b16 %v296
    %v329 = vunpack.c.l.b16 %v297
    %v330 = vunpack.c.l.b16 %v298
    %v331 = vunpack.c.l.b16 %v299
    %v332 = vunpack.c.l.b16 %v300
    %v333 = vunpack.c.l.b16 %v301
    %v334 = vunpack.c.l.b16 %v302
    %v335 = vunpack.c.l.b16 %v303
    %v336 = vunpack.c.l.b16 %v304
    %v337 = vunpack.c.l.b16 %v305
    %v338 = vunpack.c.l.b16 %v306
    %v339 = vunpack.c.l.b16 %v307
    %v340 = vunpack.c.l.b16 %v308
    %v341 = vpack.c.b16 %v326, %v325
    %v342 = vpack.c.b16 %v328, %v327
    %v343 = vpack.c.b16 %v330, %v329
    %v344 = vpack.c.b16 %v332, %v331
    %v345 = vpack.c.b16 %v334, %v333
    %v346 = vpack.c.b16 %v336, %v335
    %v347 = vpack.c.b16 %v338, %v337
    %v348 = vpack.c.b16 %v340, %v339
    %357 = vmatpush.bf16.msra.mxu0 %v348
    %358 = vmatpush.bf16.msra.mxu0 %v347
    %359 = vmatpush.bf16.msra.mxu0 %v346
    %360 = vmatpush.bf16.msra.mxu0 %v345
    %361 = vmatpush.bf16.msra.mxu0 %v344
    %362 = vmatpush.bf16.msra.mxu0 %v343
    %363 = vmatpush.bf16.msra.mxu0 %v342
    %364 = vmatpush.bf16.msra.mxu0 %v341
    %365 = vmatmul.bf16.gmra.mxu0 %v54
    %v366 = vpop.f32.mrf.mxu0
    %v367 = vadd.f32 0.0, %v366
    %v368 = vpop.f32.mrf.mxu0
    %369 = vdwg.mxu0
    %v370 = vadd.f32 %v291, %v367
    %371 = vst [vmem:[#allocation2] sm:$0xff] %v370
    // Predicated region
    $region26: #{tpu_custom_call.1} parent=1 // pred_check
      %p372 = pneg %p45
    $region27: #{tpu_custom_call.1} parent=1 // pred_check_branch
      %374 = sbr.rel (%p372) target = $region29
    $region28: #{tpu_custom_call.1} parent=1 // pred_region
      %v375 = vld [vmem:[#allocation2] sm:$0xff]
      %376 = vst [vmem:[#allocation8] sm:$0xff] %v375
    $region29: #{tpu_custom_call.1} parent=1 // pred_fallthru
      _
    // Predicated region
    $region30: #{tpu_custom_call.1} parent=1 // pred_check
      _
    $region31: #{tpu_custom_call.1} parent=1 // pred_check_branch
      %378 = sbr.rel (0) target = $region33
    $region32: #{tpu_custom_call.1} parent=1 // pred_region
      %380 = vsyncadd [#allocation5], 0
      %s382 = sshll.u32 [#allocation8], 4
      %s383 = int_to_ptr.vmem [resolvable:$true] %s382
      %s384 = sshll.u32 %s3, 4
      %s385 = int_to_ptr.hbm [resolvable:$true] %s384
      %387 = dma.vmem_to_hbm [thread:$0]  %s383, 128, %s385, [#allocation5]
    $region33: #{tpu_custom_call.1} parent=1 // pred_fallthru
      _
    // Predicated region
    $region34: #{tpu_custom_call.1} parent=1 // pred_check
      _
    $region35: #{tpu_custom_call.1} parent=1 // pred_check_branch
      %389 = sbr.rel (0) target = $region37
    $region36: #{tpu_custom_call.1} parent=1 // pred_region
      %391 = dma.done [#allocation5], 128
    $region37: #{tpu_custom_call.1} parent=1 // pred_fallthru
      _
    %392 = vsyncpa [#allocation4], 1
    %393 = vsyncpa [#allocation7], 1
    %394 = vsyncpa [#allocation5], 1

</llo_original>
